<compile_context>
chip_gen: v7x
topology: tpu7x:2x2x1
jax: 0.10.0
libtpu: 0.0.40
codegen_flags: <defaults>
</compile_context>

<pallas_src>
import functools
import itertools

import numpy as np
import jax
import jax.numpy as jnp
from jax.experimental import pallas as pl
from jax.experimental.pallas import tpu as pltpu


def _round_up(x, m):
    return ((x + m - 1) // m) * m


# --------------------------------------------------------------------------
# Pallas kernel: fused HOI matching cost tile  [TQ, TT]
# --------------------------------------------------------------------------
def _hoi_cost_kernel(lhs_ref, pred_boxes_ref, rhs_ref, boxes_t_ref, c_ref,
                     *, w_bbox, w_giou):
    f32 = jnp.float32

    # ---- single fused MXU matmul: obj-class + both verb-class terms -------
    # (operands bf16, f32 accumulation; negation / weights / denominators
    #  already folded into the RHS in glue)
    c = jnp.dot(lhs_ref[...], rhs_ref[...], preferred_element_type=f32)   # [TQ, TT]

    pb = pred_boxes_ref[...]              # [TQ, 8] f32  sub|obj cxcywh
    tb = boxes_t_ref[...]                 # [16, TT] f32
    any_nonzero = tb[8:9, :]              # [1, TT]
    all_zero = tb[9:10, :]                # [1, TT]

    # ---- L1 box cost (cdist, p=1) ------------------------------------------
    def l1(po, to):
        acc = jnp.abs(pb[:, po:po + 1] - tb[to:to + 1, :])
        for k in range(1, 4):
            acc = acc + jnp.abs(pb[:, po + k:po + k + 1] - tb[to + k:to + k + 1, :])
        return acc                         # [TQ, TT]

    c = c + w_bbox * jnp.maximum(l1(0, 0), l1(4, 4) * any_nonzero)

    # ---- generalized IoU cost ----------------------------------------------
    def giou(po, to):
        pcx = pb[:, po + 0:po + 1]; pcy = pb[:, po + 1:po + 2]
        pw = pb[:, po + 2:po + 3]; ph = pb[:, po + 3:po + 4]
        px0 = pcx - 0.5 * pw; py0 = pcy - 0.5 * ph
        px1 = pcx + 0.5 * pw; py1 = pcy + 0.5 * ph                  # [TQ, 1]

        tcx = tb[to + 0:to + 1, :]; tcy = tb[to + 1:to + 2, :]
        tw = tb[to + 2:to + 3, :]; th = tb[to + 3:to + 4, :]
        tx0 = tcx - 0.5 * tw; ty0 = tcy - 0.5 * th
        tx1 = tcx + 0.5 * tw; ty1 = tcy + 0.5 * th                  # [1, TT]

        area_p = (px1 - px0) * (py1 - py0)
        area_t = (tx1 - tx0) * (ty1 - ty0)

        wi = jnp.maximum(jnp.minimum(px1, tx1) - jnp.maximum(px0, tx0), 0.0)
        hi = jnp.maximum(jnp.minimum(py1, ty1) - jnp.maximum(py0, ty0), 0.0)
        inter = wi * hi
        union = area_p + area_t - inter
        # eps guards keep padded/degenerate boxes finite; no-op otherwise.
        iou = inter * pl.reciprocal(jnp.maximum(union, 1e-12), approx=True)

        we = jnp.maximum(jnp.maximum(px1, tx1) - jnp.minimum(px0, tx0), 0.0)
        he = jnp.maximum(jnp.maximum(py1, ty1) - jnp.minimum(py0, ty0), 0.0)
        area_e = we * he
        return iou - (area_e - union) * pl.reciprocal(
            jnp.maximum(area_e, 1e-12), approx=True)                # [TQ, TT]

    csg = -giou(0, 0)
    cog = -giou(4, 4) + csg * all_zero
    c_ref[...] = c + w_giou * jnp.maximum(csg, cog)


# --------------------------------------------------------------------------
# Glue: precompute / pack operands, one pallas_call for one or several
# target sets (forward1 + forward2 fused along T).
# --------------------------------------------------------------------------
def _hoi_cost_matrices(obj_logits, verb_logits, sub_boxes, obj_boxes,
                       target_sets, weights):
    """target_sets: list of (labels, verb_labels, sub_boxes, obj_boxes).
    Returns a list of [Q, T_i] f32 cost matrices."""
    q = int(obj_logits.shape[0])
    n_obj_cls = int(obj_logits.shape[1])
    n_verb_cls = int(verb_logits.shape[1])
    t_sizes = [int(ts[0].shape[0]) for ts in target_sets]
    t_total = sum(t_sizes)
    if t_total == 0:
        return [jnp.zeros((q, 0), jnp.float32) for _ in target_sets]

    w_obj, w_verb, w_bbox, w_giou = (float(w) for w in weights)

    labels = jnp.concatenate([jnp.asarray(ts[0], jnp.int32) for ts in target_sets])
    verb = jnp.concatenate([jnp.asarray(ts[1], jnp.float32) for ts in target_sets], axis=0)
    tsub = jnp.concatenate([jnp.asarray(ts[2], jnp.float32) for ts in target_sets], axis=0)
    tobj = jnp.concatenate([jnp.asarray(ts[3], jnp.float32) for ts in target_sets], axis=0)

    # ---- lane-dense target padding + T tile ---------------------------------
    tt = 128
    t_pad = _round_up(t_total, tt)

    # fused, pre-scaled classification RHS (f32 scaling, cast to bf16 last)
    labels_p = jnp.pad(labels, (0, t_pad - t_total), constant_values=-1)
    onehot = (labels_p[None, :] ==
              jnp.arange(n_obj_cls, dtype=jnp.int32)[:, None]).astype(jnp.float32)
    verb_t = jnp.pad(verb.T, ((0, 0), (0, t_pad - t_total)))         # [Cverb, T_pad]
    inv_pos_den = 1.0 / (jnp.sum(verb_t, axis=0, keepdims=True) + 1e-4)        # exact
    inv_neg_den = 1.0 / (jnp.sum(1.0 - verb_t, axis=0, keepdims=True) + 1e-4)  # exact
    rhs = jnp.concatenate([
        (-w_obj) * onehot,
        (-0.5 * w_verb) * (verb_t * inv_pos_den),
        (-0.5 * w_verb) * ((1.0 - verb_t) * inv_neg_den),
    ], axis=0).astype(jnp.bfloat16)                                  # [K, T_pad]
    k_dim = n_obj_cls + 2 * n_verb_cls

    # target boxes + precomputed any/all masks: [16, T_pad] f32
    any_nonzero = jnp.any(tobj != 0.0, axis=1).astype(jnp.float32)[None, :]
    boxes_rows = jnp.concatenate(
        [jnp.concatenate([tsub, tobj], axis=1).T,
         any_nonzero, 1.0 - any_nonzero,
         jnp.zeros((6, t_total), jnp.float32)], axis=0)              # [16, T]
    boxes_t = jnp.pad(boxes_rows, ((0, 0), (0, t_pad - t_total)))    # [16, T_pad]

    # ---- prediction side: probabilities precomputed in glue, bf16 LHS slab --
    obj_prob = jax.nn.softmax(jnp.asarray(obj_logits, jnp.float32), axis=-1)
    verb_prob = jax.nn.sigmoid(jnp.asarray(verb_logits, jnp.float32))
    lhs = jnp.concatenate([obj_prob, verb_prob, 1.0 - verb_prob],
                          axis=-1).astype(jnp.bfloat16)              # [Q, K]
    pred_boxes = jnp.concatenate([jnp.asarray(sub_boxes, jnp.float32),
                                  jnp.asarray(obj_boxes, jnp.float32)], axis=1)

    # ---- Q tiling: cap tq at 256, keep >= 2 grid steps whenever q > 8 -------
    tq = max(8, min(256, _round_up((q + 1) // 2, 8)))
    q_pad = _round_up(q, tq)
    lhs_p = jnp.pad(lhs, ((0, q_pad - q), (0, 0)))
    pred_boxes_p = jnp.pad(pred_boxes, ((0, q_pad - q), (0, 0)))

    kernel = functools.partial(_hoi_cost_kernel, w_bbox=w_bbox, w_giou=w_giou)

    # need-based scoped-VMEM budget (double-buffered blocks + headroom),
    # clamped to <= 48 MiB so v7x's 64 MiB VMEM keeps headroom.
    block_bytes = (tq * k_dim * 2 + tq * 8 * 4 + k_dim * tt * 2
                   + 16 * tt * 4 + tq * tt * 4)
    vmem_limit = int(min(48 * 2**20, max(8 * 2**20, 6 * block_bytes)))

    c = pl.pallas_call(
        kernel,
        out_shape=jax.ShapeDtypeStruct((q_pad, t_pad), jnp.float32),
        grid=(q_pad // tq, t_pad // tt),
        in_specs=[
            pl.BlockSpec((tq, k_dim), lambda i, j: (i, 0)),      # lhs bf16
            pl.BlockSpec((tq, 8), lambda i, j: (i, 0)),          # pred boxes f32
            pl.BlockSpec((k_dim, tt), lambda i, j: (0, j)),      # fused rhs bf16
            pl.BlockSpec((16, tt), lambda i, j: (0, j)),         # target boxes+masks
        ],
        out_specs=pl.BlockSpec((tq, tt), lambda i, j: (i, j)),
        compiler_params=pltpu.CompilerParams(
            dimension_semantics=("parallel", "parallel"),
            vmem_limit_bytes=vmem_limit),
    )(lhs_p, pred_boxes_p, rhs, boxes_t)

    c = c[:q, :t_total]
    out, off = [], 0
    for ts in t_sizes:
        out.append(c[:, off:off + ts])
        off += ts
    return out


def hoi_cost_matrix(obj_logits, verb_logits, sub_boxes, obj_boxes,
                    tgt_labels, tgt_verb, tgt_sub, tgt_obj,
                    w_obj=1.0, w_verb=1.0, w_bbox=1.0, w_giou=1.0):
    """Single-target-set convenience wrapper."""
    return _hoi_cost_matrices(obj_logits, verb_logits, sub_boxes, obj_boxes,
                              [(tgt_labels, tgt_verb, tgt_sub, tgt_obj)],
                              (w_obj, w_verb, w_bbox, w_giou))[0]


# --------------------------------------------------------------------------
# Host-side exact rectangular assignment (replaces scipy.linear_sum_assignment)
# --------------------------------------------------------------------------
# TODO(synk): linear_sum_assignment (Hungarian) is a sequential host-side
# algorithm; implemented as an exact brute-force valid only for small per-image
# target counts, not in Pallas.
def _linear_sum_assignment(cost):
    cost = np.asarray(cost, np.float64)
    nr, nc = cost.shape
    if nc == 0 or nr == 0:
        return (np.zeros((0,), np.int64), np.zeros((0,), np.int64))
    if nr >= nc:
        best_sum, best_rows = None, None
        for rows in itertools.permutations(range(nr), nc):
            s = float(sum(cost[rows[j], j] for j in range(nc)))
            if best_sum is None or s < best_sum:
                best_sum, best_rows = s, rows
        row_ind = np.array(best_rows, np.int64)
        col_ind = np.arange(nc, dtype=np.int64)
    else:
        best_sum, best_cols = None, None
        for cols in itertools.permutations(range(nc), nr):
            s = float(sum(cost[i, cols[i]] for i in range(nr)))
            if best_sum is None or s < best_sum:
                best_sum, best_cols = s, cols
        row_ind = np.arange(nr, dtype=np.int64)
        col_ind = np.array(best_cols, np.int64)
    order = np.argsort(row_ind, kind="stable")
    return row_ind[order], col_ind[order]


# --------------------------------------------------------------------------
# Matcher
# --------------------------------------------------------------------------
class HungarianMatcherHOI2Step:
    def __init__(self, cost_obj_class=1.0, cost_verb_class=1.0,
                 cost_bbox=1.0, cost_giou=1.0):
        self.cost_obj_class = cost_obj_class
        self.cost_verb_class = cost_verb_class
        self.cost_bbox = cost_bbox
        self.cost_giou = cost_giou
        assert (cost_obj_class != 0 or cost_verb_class != 0
                or cost_bbox != 0 or cost_giou != 0), "all costs cant be 0"

    def __call__(self, outputs, targets):
        return self.forward(outputs, targets)

    # -- helpers -----------------------------------------------------------
    def _weights(self):
        return (self.cost_obj_class, self.cost_verb_class,
                self.cost_bbox, self.cost_giou)

    def _flat_preds(self, outputs):
        bs, nq = outputs['pred_obj_logits'].shape[:2]
        return (bs, nq,
                outputs['pred_obj_logits'].reshape(bs * nq, -1),
                outputs['pred_verb_logits'].reshape(bs * nq, -1),
                outputs['pred_sub_boxes'].reshape(bs * nq, 4),
                outputs['pred_obj_boxes'].reshape(bs * nq, 4))

    def _targets_step1(self, targets):
        labels = jnp.concatenate([jnp.asarray(t['obj_labels'], jnp.int32)
                                  for t in targets])
        verb = jnp.concatenate([jnp.asarray(t['verb_labels'], jnp.float32)
                                for t in targets], axis=0)
        sub = jnp.concatenate([jnp.asarray(t['sub_boxes'], jnp.float32)
                               for t in targets], axis=0)
        obj = jnp.concatenate([jnp.asarray(t['obj_boxes'], jnp.float32)
                               for t in targets], axis=0)
        return labels, verb, sub, obj

    def _targets_step2(self, outputs, sizes):
        bs = len(sizes)
        # softmax().max(-1)[1] == argmax of the logits (softmax is monotone)
        labels = jnp.concatenate(
            [jnp.argmax(outputs['gt_obj_logits'][i, :sizes[i]], axis=-1
                        ).astype(jnp.int32) for i in range(bs)])
        verb = jnp.concatenate(
            [jax.nn.sigmoid(outputs['gt_verb_logits'][i, :sizes[i]])
             for i in range(bs)], axis=0)
        sub = jnp.concatenate(
            [outputs['gt_sub_boxes'][i, :sizes[i]] for i in range(bs)], axis=0)
        obj = jnp.concatenate(
            [outputs['gt_obj_boxes'][i, :sizes[i]] for i in range(bs)], axis=0)
        return labels, verb, sub, obj

    def _assign(self, C_bqt, sizes):
        indices = []
        off = 0
        for i, s in enumerate(sizes):
            block = C_bqt[i, :, off:off + s]
            indices.append(_linear_sum_assignment(block))
            off += s
        return indices

    # -- fused forward (one pallas_call + one host sync for both steps) -----
    def forward(self, outputs, targets):
        bs, nq, out_obj, out_verb, out_sub_b, out_obj_b = self._flat_preds(outputs)
        sizes = [int(t['obj_labels'].shape[0]) for t in targets]

        do_step2 = 'pred_obj_logits' in outputs
        tsets = [self._targets_step1(targets)]
        if do_step2:
            tsets.append(self._targets_step2(outputs, sizes))

        Cs = _hoi_cost_matrices(out_obj, out_verb, out_sub_b, out_obj_b,
                                tsets, self._weights())
        Cs = jax.block_until_ready(Cs)

        C1 = np.array(Cs[0])                       # writable host copy
        match_index = self._assign(C1.reshape(bs, nq, -1), sizes)
        if not do_step2:
            return match_index, None

        C2 = np.array(Cs[1])                       # writable host copy
        for i, item in enumerate(match_index):
            C2[i * nq + np.asarray(item[0], np.int64), :] = np.inf
        match_index_t = self._assign(C2.reshape(bs, nq, -1), sizes)
        return match_index, match_index_t

    # -- standalone (non-fused) versions for API parity ----------------------
    def forward1(self, outputs, targets):
        bs, nq, out_obj, out_verb, out_sub_b, out_obj_b = self._flat_preds(outputs)
        sizes = [int(t['obj_labels'].shape[0]) for t in targets]
        C = _hoi_cost_matrices(out_obj, out_verb, out_sub_b, out_obj_b,
                               [self._targets_step1(targets)], self._weights())[0]
        C = np.array(jax.block_until_ready(C)).reshape(bs, nq, -1)
        return self._assign(C, sizes), sizes

    def forward2(self, outputs, match_index, sizes):
        bs, nq, out_obj, out_verb, out_sub_b, out_obj_b = self._flat_preds(outputs)
        C = _hoi_cost_matrices(out_obj, out_verb, out_sub_b, out_obj_b,
                               [self._targets_step2(outputs, sizes)],
                               self._weights())[0]
        C = np.array(jax.block_until_ready(C))
        for i, item in enumerate(match_index):
            C[i * nq + np.asarray(item[0], np.int64), :] = np.inf
        return self._assign(C.reshape(bs, nq, -1), sizes)


# --------------------------------------------------------------------------
# Pure-numpy reference of the cost matrix (used only to validate the kernel)
# --------------------------------------------------------------------------
def _reference_cost_np(obj_logits, verb_logits, sub_boxes, obj_boxes,
                       tgt_labels, tgt_verb, tgt_sub, tgt_obj, w):
    obj_logits = np.asarray(obj_logits, np.float64)
    verb_logits = np.asarray(verb_logits, np.float64)
    sub_boxes = np.asarray(sub_boxes, np.float64)
    obj_boxes = np.asarray(obj_boxes, np.float64)
    tgt_labels = np.asarray(tgt_labels, np.int64)
    tgt_verb = np.asarray(tgt_verb, np.float64)
    tgt_sub = np.asarray(tgt_sub, np.float64)
    tgt_obj = np.asarray(tgt_obj, np.float64)

    e = np.exp(obj_logits - obj_logits.max(-1, keepdims=True))
    obj_prob = e / e.sum(-1, keepdims=True)
    cost_obj_class = -obj_prob[:, tgt_labels]

    verb_prob = 1.0 / (1.0 + np.exp(-verb_logits))
    vT = tgt_verb.T
    cost_verb_class = -((verb_prob @ vT) / (vT.sum(0, keepdims=True) + 1e-4)
                        + ((1 - verb_prob) @ (1 - vT))
                        / ((1 - vT).sum(0, keepdims=True) + 1e-4)) / 2.0

    cost_sub_bbox = np.abs(sub_boxes[:, None, :] - tgt_sub[None, :, :]).sum(-1)
    cost_obj_bbox = (np.abs(obj_boxes[:, None, :] - tgt_obj[None, :, :]).sum(-1)
                     * (tgt_obj != 0).any(1)[None, :])
    cost_bbox = np.maximum(cost_sub_bbox, cost_obj_bbox)

    def cxcywh_to_xyxy(b):
        cx, cy, ww, hh = b[:, 0], b[:, 1], b[:, 2], b[:, 3]
        return np.stack([cx - 0.5 * ww, cy - 0.5 * hh,
                         cx + 0.5 * ww, cy + 0.5 * hh], -1)

    def giou(a, b):
        area_a = (a[:, 2] - a[:, 0]) * (a[:, 3] - a[:, 1])
        area_b = (b[:, 2] - b[:, 0]) * (b[:, 3] - b[:, 1])
        lt = np.maximum(a[:, None, :2], b[None, :, :2])
        rb = np.minimum(a[:, None, 2:], b[None, :, 2:])
        wh = np.clip(rb - lt, 0, None)
        inter = wh[..., 0] * wh[..., 1]
        union = area_a[:, None] + area_b[None, :] - inter
        iou = inter / union
        lt2 = np.minimum(a[:, None, :2], b[None, :, :2])
        rb2 = np.maximum(a[:, None, 2:], b[None, :, 2:])
        wh2 = np.clip(rb2 - lt2, 0, None)
        area = wh2[..., 0] * wh2[..., 1]
        return iou - (area - union) / area

    csg = -giou(cxcywh_to_xyxy(sub_boxes), cxcywh_to_xyxy(tgt_sub))
    cog = (-giou(cxcywh_to_xyxy(obj_boxes), cxcywh_to_xyxy(tgt_obj))
           + csg * (tgt_obj == 0).all(1)[None, :])
    cost_giou = np.maximum(csg, cog)
    return (w[0] * cost_obj_class + w[1] * cost_verb_class
            + w[2] * cost_bbox + w[3] * cost_giou)


# --------------------------------------------------------------------------
# Demo / test
# --------------------------------------------------------------------------
def _rand_boxes(key, n):
    k1, k2 = jax.random.split(key)
    center = jax.random.uniform(k1, (n, 2), minval=0.25, maxval=0.75)
    wh = jax.random.uniform(k2, (n, 2), minval=0.10, maxval=0.30)
    return jnp.concatenate([center, wh], axis=-1).astype(jnp.float32)


if __name__ == "__main__":
    key = jax.random.PRNGKey(0)
    bs, nq = 2, 8
    n_obj_classes, n_verb_classes = 12, 8
    sizes = [3, 2]

    keys = jax.random.split(key, 20)
    outputs = {
        'pred_obj_logits': jax.random.normal(keys[0], (bs, nq, n_obj_classes), jnp.float32),
        'pred_verb_logits': jax.random.normal(keys[1], (bs, nq, n_verb_classes), jnp.float32),
        'pred_sub_boxes': _rand_boxes(keys[2], bs * nq).reshape(bs, nq, 4),
        'pred_obj_boxes': _rand_boxes(keys[3], bs * nq).reshape(bs, nq, 4),
        'gt_obj_logits': jax.random.normal(keys[4], (bs, nq, n_obj_classes), jnp.float32),
        'gt_verb_logits': jax.random.normal(keys[5], (bs, nq, n_verb_classes), jnp.float32),
        'gt_sub_boxes': _rand_boxes(keys[6], bs * nq).reshape(bs, nq, 4),
        'gt_obj_boxes': _rand_boxes(keys[7], bs * nq).reshape(bs, nq, 4),
    }

    targets = []
    for i, s in enumerate(sizes):
        kb = jax.random.split(keys[8 + i], 4)
        obj_boxes = _rand_boxes(kb[3], s)
        if i == 0:
            # one all-zero object box to exercise the "no object" masking path
            obj_boxes = obj_boxes.at[0].set(0.0)
        targets.append({
            'obj_labels': jax.random.randint(kb[0], (s,), 0, n_obj_classes, jnp.int32),
            'verb_labels': (jax.random.uniform(kb[1], (s, n_verb_classes)) > 0.5
                            ).astype(jnp.float32),
            'sub_boxes': _rand_boxes(kb[2], s),
            'obj_boxes': obj_boxes,
        })

    matcher = HungarianMatcherHOI2Step(cost_obj_class=1.0, cost_verb_class=1.0,
                                       cost_bbox=2.5, cost_giou=1.0)

    # --- validate the Pallas cost-matrix kernel against a numpy reference ---
    flat_obj = outputs['pred_obj_logits'].reshape(bs * nq, -1)
    flat_verb = outputs['pred_verb_logits'].reshape(bs * nq, -1)
    flat_sub = outputs['pred_sub_boxes'].reshape(bs * nq, 4)
    flat_objb = outputs['pred_obj_boxes'].reshape(bs * nq, 4)
    tgt_labels = jnp.concatenate([t['obj_labels'] for t in targets])
    tgt_verb = jnp.concatenate([t['verb_labels'] for t in targets], axis=0)
    tgt_sub = jnp.concatenate([t['sub_boxes'] for t in targets], axis=0)
    tgt_obj = jnp.concatenate([t['obj_boxes'] for t in targets], axis=0)

    C_kernel = hoi_cost_matrix(flat_obj, flat_verb, flat_sub, flat_objb,
                               tgt_labels, tgt_verb, tgt_sub, tgt_obj,
                               matcher.cost_obj_class, matcher.cost_verb_class,
                               matcher.cost_bbox, matcher.cost_giou)
    C_kernel = np.asarray(jax.block_until_ready(C_kernel))
    C_ref = _reference_cost_np(flat_obj, flat_verb, flat_sub, flat_objb,
                               tgt_labels, tgt_verb, tgt_sub, tgt_obj,
                               (matcher.cost_obj_class, matcher.cost_verb_class,
                                matcher.cost_bbox, matcher.cost_giou))
    # tolerance accounts for bf16 MXU operands + EUP approximate reciprocals (GIoU)
    if not np.allclose(C_kernel, C_ref, atol=1e-2, rtol=1e-2):
        raise AssertionError("Pallas cost matrix mismatch vs reference")

    # --- full two-step matcher forward pass (fused single pallas_call) ---
    match_index, match_index_t = matcher(outputs, targets)
    assert len(match_index) == bs and len(match_index_t) == bs
    for (r, c), s in zip(match_index, sizes):
        assert r.shape == (s,) and c.shape == (s,)
    for (r, c), s in zip(match_index_t, sizes):
        assert r.shape == (s,) and c.shape == (s,)

    print("KERNEL_OK")
</pallas_src>

<mosaic_0001>
module attributes {stable_mosaic.version = 11 : i64} {
  func.func @_hoi_cost_kernel(%arg0: i32, %arg1: i32, %arg2: memref<8x28xbf16, #tpu.memory_space<vmem>>, %arg3: memref<8x8xf32, #tpu.memory_space<vmem>>, %arg4: memref<28x128xbf16, #tpu.memory_space<vmem>>, %arg5: memref<16x128xf32, #tpu.memory_space<vmem>>, %arg6: memref<8x128xf32, #tpu.memory_space<vmem>>) attributes {dimension_semantics = [#tpu.dimension_semantics<parallel>, #tpu.dimension_semantics<parallel>], iteration_bounds = array<i64: 2, 1>, scalar_prefetch = 0 : i64, scratch_operands = 0 : i64, tpu.core_type = #tpu.core_type<tc>, window_params = [{transform_indices = @transform_0, window_bounds = array<i64: 8, 28>}, {transform_indices = @transform_1, window_bounds = array<i64: 8, 8>}, {transform_indices = @transform_2, window_bounds = array<i64: 28, 128>}, {transform_indices = @transform_3, window_bounds = array<i64: 16, 128>}, {transform_indices = @transform_4, window_bounds = array<i64: 8, 128>}]} {
    %c0 = arith.constant 0 : index
    %c0_0 = arith.constant 0 : index
    %0 = vector.load %arg2[%c0, %c0_0] : memref<8x28xbf16, #tpu.memory_space<vmem>>, vector<8x28xbf16>
    %c0_1 = arith.constant 0 : index
    %c0_2 = arith.constant 0 : index
    %1 = vector.load %arg4[%c0_1, %c0_2] : memref<28x128xbf16, #tpu.memory_space<vmem>>, vector<28x128xbf16>
    %cst = arith.constant dense<0.000000e+00> : vector<8x128xf32>
    %2 = tpu.matmul %0, %1, %cst {dimension_numbers = #tpu.dot_dimension_numbers<[1], [0], [0], [1], [0, 0, 1, 1], [], []>} : vector<8x28xbf16>, vector<28x128xbf16>, vector<8x128xf32> -> vector<8x128xf32>
    %c0_3 = arith.constant 0 : index
    %c0_4 = arith.constant 0 : index
    %3 = vector.load %arg3[%c0_3, %c0_4] : memref<8x8xf32, #tpu.memory_space<vmem>>, vector<8x8xf32>
    %c0_5 = arith.constant 0 : index
    %c0_6 = arith.constant 0 : index
    %4 = vector.load %arg5[%c0_5, %c0_6] : memref<16x128xf32, #tpu.memory_space<vmem>>, vector<16x128xf32>
    %5 = vector.extract_strided_slice %4 {offsets = [8, 0], sizes = [1, 128], strides = [1, 1]} : vector<16x128xf32> to vector<1x128xf32>
    %6 = vector.extract_strided_slice %4 {offsets = [9, 0], sizes = [1, 128], strides = [1, 1]} : vector<16x128xf32> to vector<1x128xf32>
    %7 = vector.extract_strided_slice %3 {offsets = [0, 0], sizes = [8, 1], strides = [1, 1]} : vector<8x8xf32> to vector<8x1xf32>
    %8 = vector.extract_strided_slice %4 {offsets = [0, 0], sizes = [1, 128], strides = [1, 1]} : vector<16x128xf32> to vector<1x128xf32>
    %9 = vector.broadcast %7 : vector<8x1xf32> to vector<8x128xf32>
    %10 = vector.broadcast %8 : vector<1x128xf32> to vector<8x128xf32>
    %11 = arith.subf %9, %10 : vector<8x128xf32>
    %12 = math.absf %11 : vector<8x128xf32>
    %13 = vector.extract_strided_slice %3 {offsets = [0, 1], sizes = [8, 1], strides = [1, 1]} : vector<8x8xf32> to vector<8x1xf32>
    %14 = vector.extract_strided_slice %4 {offsets = [1, 0], sizes = [1, 128], strides = [1, 1]} : vector<16x128xf32> to vector<1x128xf32>
    %15 = vector.broadcast %13 : vector<8x1xf32> to vector<8x128xf32>
    %16 = vector.broadcast %14 : vector<1x128xf32> to vector<8x128xf32>
    %17 = arith.subf %15, %16 : vector<8x128xf32>
    %18 = math.absf %17 : vector<8x128xf32>
    %19 = arith.addf %12, %18 : vector<8x128xf32>
    %20 = vector.extract_strided_slice %3 {offsets = [0, 2], sizes = [8, 1], strides = [1, 1]} : vector<8x8xf32> to vector<8x1xf32>
    %21 = vector.extract_strided_slice %4 {offsets = [2, 0], sizes = [1, 128], strides = [1, 1]} : vector<16x128xf32> to vector<1x128xf32>
    %22 = vector.broadcast %20 : vector<8x1xf32> to vector<8x128xf32>
    %23 = vector.broadcast %21 : vector<1x128xf32> to vector<8x128xf32>
    %24 = arith.subf %22, %23 : vector<8x128xf32>
    %25 = math.absf %24 : vector<8x128xf32>
    %26 = arith.addf %19, %25 : vector<8x128xf32>
    %27 = vector.extract_strided_slice %3 {offsets = [0, 3], sizes = [8, 1], strides = [1, 1]} : vector<8x8xf32> to vector<8x1xf32>
    %28 = vector.extract_strided_slice %4 {offsets = [3, 0], sizes = [1, 128], strides = [1, 1]} : vector<16x128xf32> to vector<1x128xf32>
    %29 = vector.broadcast %27 : vector<8x1xf32> to vector<8x128xf32>
    %30 = vector.broadcast %28 : vector<1x128xf32> to vector<8x128xf32>
    %31 = arith.subf %29, %30 : vector<8x128xf32>
    %32 = math.absf %31 : vector<8x128xf32>
    %33 = arith.addf %26, %32 : vector<8x128xf32>
    %34 = vector.extract_strided_slice %3 {offsets = [0, 4], sizes = [8, 1], strides = [1, 1]} : vector<8x8xf32> to vector<8x1xf32>
    %35 = vector.extract_strided_slice %4 {offsets = [4, 0], sizes = [1, 128], strides = [1, 1]} : vector<16x128xf32> to vector<1x128xf32>
    %36 = vector.broadcast %34 : vector<8x1xf32> to vector<8x128xf32>
    %37 = vector.broadcast %35 : vector<1x128xf32> to vector<8x128xf32>
    %38 = arith.subf %36, %37 : vector<8x128xf32>
    %39 = math.absf %38 : vector<8x128xf32>
    %40 = vector.extract_strided_slice %3 {offsets = [0, 5], sizes = [8, 1], strides = [1, 1]} : vector<8x8xf32> to vector<8x1xf32>
    %41 = vector.extract_strided_slice %4 {offsets = [5, 0], sizes = [1, 128], strides = [1, 1]} : vector<16x128xf32> to vector<1x128xf32>
    %42 = vector.broadcast %40 : vector<8x1xf32> to vector<8x128xf32>
    %43 = vector.broadcast %41 : vector<1x128xf32> to vector<8x128xf32>
    %44 = arith.subf %42, %43 : vector<8x128xf32>
    %45 = math.absf %44 : vector<8x128xf32>
    %46 = arith.addf %39, %45 : vector<8x128xf32>
    %47 = vector.extract_strided_slice %3 {offsets = [0, 6], sizes = [8, 1], strides = [1, 1]} : vector<8x8xf32> to vector<8x1xf32>
    %48 = vector.extract_strided_slice %4 {offsets = [6, 0], sizes = [1, 128], strides = [1, 1]} : vector<16x128xf32> to vector<1x128xf32>
    %49 = vector.broadcast %47 : vector<8x1xf32> to vector<8x128xf32>
    %50 = vector.broadcast %48 : vector<1x128xf32> to vector<8x128xf32>
    %51 = arith.subf %49, %50 : vector<8x128xf32>
    %52 = math.absf %51 : vector<8x128xf32>
    %53 = arith.addf %46, %52 : vector<8x128xf32>
    %54 = vector.extract_strided_slice %3 {offsets = [0, 7], sizes = [8, 1], strides = [1, 1]} : vector<8x8xf32> to vector<8x1xf32>
    %55 = vector.extract_strided_slice %4 {offsets = [7, 0], sizes = [1, 128], strides = [1, 1]} : vector<16x128xf32> to vector<1x128xf32>
    %56 = vector.broadcast %54 : vector<8x1xf32> to vector<8x128xf32>
    %57 = vector.broadcast %55 : vector<1x128xf32> to vector<8x128xf32>
    %58 = arith.subf %56, %57 : vector<8x128xf32>
    %59 = math.absf %58 : vector<8x128xf32>
    %60 = arith.addf %53, %59 : vector<8x128xf32>
    %61 = vector.broadcast %5 : vector<1x128xf32> to vector<8x128xf32>
    %62 = arith.mulf %60, %61 : vector<8x128xf32>
    %63 = arith.maximumf %33, %62 : vector<8x128xf32>
    %cst_7 = arith.constant 2.500000e+00 : f32
    %64 = vector.broadcast %cst_7 : f32 to vector<8x128xf32>
    %65 = arith.mulf %64, %63 : vector<8x128xf32>
    %66 = arith.addf %2, %65 : vector<8x128xf32>
    %67 = vector.extract_strided_slice %3 {offsets = [0, 0], sizes = [8, 1], strides = [1, 1]} : vector<8x8xf32> to vector<8x1xf32>
    %68 = vector.extract_strided_slice %3 {offsets = [0, 1], sizes = [8, 1], strides = [1, 1]} : vector<8x8xf32> to vector<8x1xf32>
    %69 = vector.extract_strided_slice %3 {offsets = [0, 2], sizes = [8, 1], strides = [1, 1]} : vector<8x8xf32> to vector<8x1xf32>
    %70 = vector.extract_strided_slice %3 {offsets = [0, 3], sizes = [8, 1], strides = [1, 1]} : vector<8x8xf32> to vector<8x1xf32>
    %cst_8 = arith.constant 5.000000e-01 : f32
    %71 = vector.broadcast %cst_8 : f32 to vector<8x1xf32>
    %72 = arith.mulf %71, %69 : vector<8x1xf32>
    %73 = arith.subf %67, %72 : vector<8x1xf32>
    %cst_9 = arith.constant 5.000000e-01 : f32
    %74 = vector.broadcast %cst_9 : f32 to vector<8x1xf32>
    %75 = arith.mulf %74, %70 : vector<8x1xf32>
    %76 = arith.subf %68, %75 : vector<8x1xf32>
    %cst_10 = arith.constant 5.000000e-01 : f32
    %77 = vector.broadcast %cst_10 : f32 to vector<8x1xf32>
    %78 = arith.mulf %77, %69 : vector<8x1xf32>
    %79 = arith.addf %67, %78 : vector<8x1xf32>
    %cst_11 = arith.constant 5.000000e-01 : f32
    %80 = vector.broadcast %cst_11 : f32 to vector<8x1xf32>
    %81 = arith.mulf %80, %70 : vector<8x1xf32>
    %82 = arith.addf %68, %81 : vector<8x1xf32>
    %83 = vector.extract_strided_slice %4 {offsets = [0, 0], sizes = [1, 128], strides = [1, 1]} : vector<16x128xf32> to vector<1x128xf32>
    %84 = vector.extract_strided_slice %4 {offsets = [1, 0], sizes = [1, 128], strides = [1, 1]} : vector<16x128xf32> to vector<1x128xf32>
    %85 = vector.extract_strided_slice %4 {offsets = [2, 0], sizes = [1, 128], strides = [1, 1]} : vector<16x128xf32> to vector<1x128xf32>
    %86 = vector.extract_strided_slice %4 {offsets = [3, 0], sizes = [1, 128], strides = [1, 1]} : vector<16x128xf32> to vector<1x128xf32>
    %cst_12 = arith.constant 5.000000e-01 : f32
    %87 = vector.broadcast %cst_12 : f32 to vector<1x128xf32>
    %88 = arith.mulf %87, %85 : vector<1x128xf32>
    %89 = arith.subf %83, %88 : vector<1x128xf32>
    %cst_13 = arith.constant 5.000000e-01 : f32
    %90 = vector.broadcast %cst_13 : f32 to vector<1x128xf32>
    %91 = arith.mulf %90, %86 : vector<1x128xf32>
    %92 = arith.subf %84, %91 : vector<1x128xf32>
    %cst_14 = arith.constant 5.000000e-01 : f32
    %93 = vector.broadcast %cst_14 : f32 to vector<1x128xf32>
    %94 = arith.mulf %93, %85 : vector<1x128xf32>
    %95 = arith.addf %83, %94 : vector<1x128xf32>
    %cst_15 = arith.constant 5.000000e-01 : f32
    %96 = vector.broadcast %cst_15 : f32 to vector<1x128xf32>
    %97 = arith.mulf %96, %86 : vector<1x128xf32>
    %98 = arith.addf %84, %97 : vector<1x128xf32>
    %99 = arith.subf %79, %73 : vector<8x1xf32>
    %100 = arith.subf %82, %76 : vector<8x1xf32>
    %101 = arith.mulf %99, %100 : vector<8x1xf32>
    %102 = arith.subf %95, %89 : vector<1x128xf32>
    %103 = arith.subf %98, %92 : vector<1x128xf32>
    %104 = arith.mulf %102, %103 : vector<1x128xf32>
    %105 = vector.broadcast %79 : vector<8x1xf32> to vector<8x128xf32>
    %106 = vector.broadcast %95 : vector<1x128xf32> to vector<8x128xf32>
    %107 = arith.minimumf %105, %106 : vector<8x128xf32>
    %108 = vector.broadcast %73 : vector<8x1xf32> to vector<8x128xf32>
    %109 = vector.broadcast %89 : vector<1x128xf32> to vector<8x128xf32>
    %110 = arith.maximumf %108, %109 : vector<8x128xf32>
    %111 = arith.subf %107, %110 : vector<8x128xf32>
    %cst_16 = arith.constant 0.000000e+00 : f32
    %112 = vector.broadcast %cst_16 : f32 to vector<8x128xf32>
    %113 = arith.maximumf %111, %112 : vector<8x128xf32>
    %114 = vector.broadcast %82 : vector<8x1xf32> to vector<8x128xf32>
    %115 = vector.broadcast %98 : vector<1x128xf32> to vector<8x128xf32>
    %116 = arith.minimumf %114, %115 : vector<8x128xf32>
    %117 = vector.broadcast %76 : vector<8x1xf32> to vector<8x128xf32>
    %118 = vector.broadcast %92 : vector<1x128xf32> to vector<8x128xf32>
    %119 = arith.maximumf %117, %118 : vector<8x128xf32>
    %120 = arith.subf %116, %119 : vector<8x128xf32>
    %cst_17 = arith.constant 0.000000e+00 : f32
    %121 = vector.broadcast %cst_17 : f32 to vector<8x128xf32>
    %122 = arith.maximumf %120, %121 : vector<8x128xf32>
    %123 = arith.mulf %113, %122 : vector<8x128xf32>
    %124 = vector.broadcast %101 : vector<8x1xf32> to vector<8x128xf32>
    %125 = vector.broadcast %104 : vector<1x128xf32> to vector<8x128xf32>
    %126 = arith.addf %124, %125 : vector<8x128xf32>
    %127 = arith.subf %126, %123 : vector<8x128xf32>
    %cst_18 = arith.constant 9.99999996E-13 : f32
    %128 = vector.broadcast %cst_18 : f32 to vector<8x128xf32>
    %129 = arith.maximumf %127, %128 : vector<8x128xf32>
    %130 = tpu.reciprocal %129 {approx = true} : vector<8x128xf32> -> vector<8x128xf32>
    %131 = arith.mulf %123, %130 : vector<8x128xf32>
    %132 = vector.broadcast %79 : vector<8x1xf32> to vector<8x128xf32>
    %133 = vector.broadcast %95 : vector<1x128xf32> to vector<8x128xf32>
    %134 = arith.maximumf %132, %133 : vector<8x128xf32>
    %135 = vector.broadcast %73 : vector<8x1xf32> to vector<8x128xf32>
    %136 = vector.broadcast %89 : vector<1x128xf32> to vector<8x128xf32>
    %137 = arith.minimumf %135, %136 : vector<8x128xf32>
    %138 = arith.subf %134, %137 : vector<8x128xf32>
    %cst_19 = arith.constant 0.000000e+00 : f32
    %139 = vector.broadcast %cst_19 : f32 to vector<8x128xf32>
    %140 = arith.maximumf %138, %139 : vector<8x128xf32>
    %141 = vector.broadcast %82 : vector<8x1xf32> to vector<8x128xf32>
    %142 = vector.broadcast %98 : vector<1x128xf32> to vector<8x128xf32>
    %143 = arith.maximumf %141, %142 : vector<8x128xf32>
    %144 = vector.broadcast %76 : vector<8x1xf32> to vector<8x128xf32>
    %145 = vector.broadcast %92 : vector<1x128xf32> to vector<8x128xf32>
    %146 = arith.minimumf %144, %145 : vector<8x128xf32>
    %147 = arith.subf %143, %146 : vector<8x128xf32>
    %cst_20 = arith.constant 0.000000e+00 : f32
    %148 = vector.broadcast %cst_20 : f32 to vector<8x128xf32>
    %149 = arith.maximumf %147, %148 : vector<8x128xf32>
    %150 = arith.mulf %140, %149 : vector<8x128xf32>
    %151 = arith.subf %150, %127 : vector<8x128xf32>
    %cst_21 = arith.constant 9.99999996E-13 : f32
    %152 = vector.broadcast %cst_21 : f32 to vector<8x128xf32>
    %153 = arith.maximumf %150, %152 : vector<8x128xf32>
    %154 = tpu.reciprocal %153 {approx = true} : vector<8x128xf32> -> vector<8x128xf32>
    %155 = arith.mulf %151, %154 : vector<8x128xf32>
    %156 = arith.subf %131, %155 : vector<8x128xf32>
    %cst_22 = arith.constant 0.000000e+00 : f32
    %157 = vector.broadcast %cst_22 : f32 to vector<8x128xf32>
    %158 = arith.subf %157, %156 : vector<8x128xf32>
    %159 = vector.extract_strided_slice %3 {offsets = [0, 4], sizes = [8, 1], strides = [1, 1]} : vector<8x8xf32> to vector<8x1xf32>
    %160 = vector.extract_strided_slice %3 {offsets = [0, 5], sizes = [8, 1], strides = [1, 1]} : vector<8x8xf32> to vector<8x1xf32>
    %161 = vector.extract_strided_slice %3 {offsets = [0, 6], sizes = [8, 1], strides = [1, 1]} : vector<8x8xf32> to vector<8x1xf32>
    %162 = vector.extract_strided_slice %3 {offsets = [0, 7], sizes = [8, 1], strides = [1, 1]} : vector<8x8xf32> to vector<8x1xf32>
    %cst_23 = arith.constant 5.000000e-01 : f32
    %163 = vector.broadcast %cst_23 : f32 to vector<8x1xf32>
    %164 = arith.mulf %163, %161 : vector<8x1xf32>
    %165 = arith.subf %159, %164 : vector<8x1xf32>
    %cst_24 = arith.constant 5.000000e-01 : f32
    %166 = vector.broadcast %cst_24 : f32 to vector<8x1xf32>
    %167 = arith.mulf %166, %162 : vector<8x1xf32>
    %168 = arith.subf %160, %167 : vector<8x1xf32>
    %cst_25 = arith.constant 5.000000e-01 : f32
    %169 = vector.broadcast %cst_25 : f32 to vector<8x1xf32>
    %170 = arith.mulf %169, %161 : vector<8x1xf32>
    %171 = arith.addf %159, %170 : vector<8x1xf32>
    %cst_26 = arith.constant 5.000000e-01 : f32
    %172 = vector.broadcast %cst_26 : f32 to vector<8x1xf32>
    %173 = arith.mulf %172, %162 : vector<8x1xf32>
    %174 = arith.addf %160, %173 : vector<8x1xf32>
    %175 = vector.extract_strided_slice %4 {offsets = [4, 0], sizes = [1, 128], strides = [1, 1]} : vector<16x128xf32> to vector<1x128xf32>
    %176 = vector.extract_strided_slice %4 {offsets = [5, 0], sizes = [1, 128], strides = [1, 1]} : vector<16x128xf32> to vector<1x128xf32>
    %177 = vector.extract_strided_slice %4 {offsets = [6, 0], sizes = [1, 128], strides = [1, 1]} : vector<16x128xf32> to vector<1x128xf32>
    %178 = vector.extract_strided_slice %4 {offsets = [7, 0], sizes = [1, 128], strides = [1, 1]} : vector<16x128xf32> to vector<1x128xf32>
    %cst_27 = arith.constant 5.000000e-01 : f32
    %179 = vector.broadcast %cst_27 : f32 to vector<1x128xf32>
    %180 = arith.mulf %179, %177 : vector<1x128xf32>
    %181 = arith.subf %175, %180 : vector<1x128xf32>
    %cst_28 = arith.constant 5.000000e-01 : f32
    %182 = vector.broadcast %cst_28 : f32 to vector<1x128xf32>
    %183 = arith.mulf %182, %178 : vector<1x128xf32>
    %184 = arith.subf %176, %183 : vector<1x128xf32>
    %cst_29 = arith.constant 5.000000e-01 : f32
    %185 = vector.broadcast %cst_29 : f32 to vector<1x128xf32>
    %186 = arith.mulf %185, %177 : vector<1x128xf32>
    %187 = arith.addf %175, %186 : vector<1x128xf32>
    %cst_30 = arith.constant 5.000000e-01 : f32
    %188 = vector.broadcast %cst_30 : f32 to vector<1x128xf32>
    %189 = arith.mulf %188, %178 : vector<1x128xf32>
    %190 = arith.addf %176, %189 : vector<1x128xf32>
    %191 = arith.subf %171, %165 : vector<8x1xf32>
    %192 = arith.subf %174, %168 : vector<8x1xf32>
    %193 = arith.mulf %191, %192 : vector<8x1xf32>
    %194 = arith.subf %187, %181 : vector<1x128xf32>
    %195 = arith.subf %190, %184 : vector<1x128xf32>
    %196 = arith.mulf %194, %195 : vector<1x128xf32>
    %197 = vector.broadcast %171 : vector<8x1xf32> to vector<8x128xf32>
    %198 = vector.broadcast %187 : vector<1x128xf32> to vector<8x128xf32>
    %199 = arith.minimumf %197, %198 : vector<8x128xf32>
    %200 = vector.broadcast %165 : vector<8x1xf32> to vector<8x128xf32>
    %201 = vector.broadcast %181 : vector<1x128xf32> to vector<8x128xf32>
    %202 = arith.maximumf %200, %201 : vector<8x128xf32>
    %203 = arith.subf %199, %202 : vector<8x128xf32>
    %cst_31 = arith.constant 0.000000e+00 : f32
    %204 = vector.broadcast %cst_31 : f32 to vector<8x128xf32>
    %205 = arith.maximumf %203, %204 : vector<8x128xf32>
    %206 = vector.broadcast %174 : vector<8x1xf32> to vector<8x128xf32>
    %207 = vector.broadcast %190 : vector<1x128xf32> to vector<8x128xf32>
    %208 = arith.minimumf %206, %207 : vector<8x128xf32>
    %209 = vector.broadcast %168 : vector<8x1xf32> to vector<8x128xf32>
    %210 = vector.broadcast %184 : vector<1x128xf32> to vector<8x128xf32>
    %211 = arith.maximumf %209, %210 : vector<8x128xf32>
    %212 = arith.subf %208, %211 : vector<8x128xf32>
    %cst_32 = arith.constant 0.000000e+00 : f32
    %213 = vector.broadcast %cst_32 : f32 to vector<8x128xf32>
    %214 = arith.maximumf %212, %213 : vector<8x128xf32>
    %215 = arith.mulf %205, %214 : vector<8x128xf32>
    %216 = vector.broadcast %193 : vector<8x1xf32> to vector<8x128xf32>
    %217 = vector.broadcast %196 : vector<1x128xf32> to vector<8x128xf32>
    %218 = arith.addf %216, %217 : vector<8x128xf32>
    %219 = arith.subf %218, %215 : vector<8x128xf32>
    %cst_33 = arith.constant 9.99999996E-13 : f32
    %220 = vector.broadcast %cst_33 : f32 to vector<8x128xf32>
    %221 = arith.maximumf %219, %220 : vector<8x128xf32>
    %222 = tpu.reciprocal %221 {approx = true} : vector<8x128xf32> -> vector<8x128xf32>
    %223 = arith.mulf %215, %222 : vector<8x128xf32>
    %224 = vector.broadcast %171 : vector<8x1xf32> to vector<8x128xf32>
    %225 = vector.broadcast %187 : vector<1x128xf32> to vector<8x128xf32>
    %226 = arith.maximumf %224, %225 : vector<8x128xf32>
    %227 = vector.broadcast %165 : vector<8x1xf32> to vector<8x128xf32>
    %228 = vector.broadcast %181 : vector<1x128xf32> to vector<8x128xf32>
    %229 = arith.minimumf %227, %228 : vector<8x128xf32>
    %230 = arith.subf %226, %229 : vector<8x128xf32>
    %cst_34 = arith.constant 0.000000e+00 : f32
    %231 = vector.broadcast %cst_34 : f32 to vector<8x128xf32>
    %232 = arith.maximumf %230, %231 : vector<8x128xf32>
    %233 = vector.broadcast %174 : vector<8x1xf32> to vector<8x128xf32>
    %234 = vector.broadcast %190 : vector<1x128xf32> to vector<8x128xf32>
    %235 = arith.maximumf %233, %234 : vector<8x128xf32>
    %236 = vector.broadcast %168 : vector<8x1xf32> to vector<8x128xf32>
    %237 = vector.broadcast %184 : vector<1x128xf32> to vector<8x128xf32>
    %238 = arith.minimumf %236, %237 : vector<8x128xf32>
    %239 = arith.subf %235, %238 : vector<8x128xf32>
    %cst_35 = arith.constant 0.000000e+00 : f32
    %240 = vector.broadcast %cst_35 : f32 to vector<8x128xf32>
    %241 = arith.maximumf %239, %240 : vector<8x128xf32>
    %242 = arith.mulf %232, %241 : vector<8x128xf32>
    %243 = arith.subf %242, %219 : vector<8x128xf32>
    %cst_36 = arith.constant 9.99999996E-13 : f32
    %244 = vector.broadcast %cst_36 : f32 to vector<8x128xf32>
    %245 = arith.maximumf %242, %244 : vector<8x128xf32>
    %246 = tpu.reciprocal %245 {approx = true} : vector<8x128xf32> -> vector<8x128xf32>
    %247 = arith.mulf %243, %246 : vector<8x128xf32>
    %248 = arith.subf %223, %247 : vector<8x128xf32>
    %cst_37 = arith.constant 0.000000e+00 : f32
    %249 = vector.broadcast %cst_37 : f32 to vector<8x128xf32>
    %250 = arith.subf %249, %248 : vector<8x128xf32>
    %251 = vector.broadcast %6 : vector<1x128xf32> to vector<8x128xf32>
    %252 = arith.mulf %158, %251 : vector<8x128xf32>
    %253 = arith.addf %250, %252 : vector<8x128xf32>
    %254 = arith.maximumf %158, %253 : vector<8x128xf32>
    %cst_38 = arith.constant 1.000000e+00 : f32
    %255 = vector.broadcast %cst_38 : f32 to vector<8x128xf32>
    %256 = arith.mulf %255, %254 : vector<8x128xf32>
    %257 = arith.addf %66, %256 : vector<8x128xf32>
    %c0_39 = arith.constant 0 : index
    %c0_40 = arith.constant 0 : index
    %258 = vector.load %arg6[%c0_39, %c0_40] : memref<8x128xf32, #tpu.memory_space<vmem>>, vector<8x128xf32>
    tpu.vector_store %arg6[%c0_39, %c0_40], %257 {strides = array<i32>} : memref<8x128xf32, #tpu.memory_space<vmem>>, vector<8x128xf32>,
    return
  }
  func.func @transform_0(%arg0: i32, %arg1: i32) -> (i32, i32) {
    %c0_i32 = arith.constant 0 : i32
    %c0_i32_0 = arith.constant 0 : i32
    return %arg0, %c0_i32 : i32, i32
  }
  func.func @transform_1(%arg0: i32, %arg1: i32) -> (i32, i32) {
    %c0_i32 = arith.constant 0 : i32
    %c0_i32_0 = arith.constant 0 : i32
    return %arg0, %c0_i32 : i32, i32
  }
  func.func @transform_2(%arg0: i32, %arg1: i32) -> (i32, i32) {
    %c0_i32 = arith.constant 0 : i32
    %c0_i32_0 = arith.constant 0 : i32
    return %c0_i32, %arg1 : i32, i32
  }
  func.func @transform_3(%arg0: i32, %arg1: i32) -> (i32, i32) {
    %c0_i32 = arith.constant 0 : i32
    %c0_i32_0 = arith.constant 0 : i32
    return %c0_i32, %arg1 : i32, i32
  }
  func.func @transform_4(%arg0: i32, %arg1: i32) -> (i32, i32) {
    %c0_i32 = arith.constant 0 : i32
    return %arg0, %arg1 : i32, i32
  }
}

</mosaic_0001>

<llo_original>
// kernel: tpu_custom_call.1
$region0: #{tpu_custom_call.1}
  #allocation0 [shape = 'u32[]', space=smem, size = 0x4, offset = 0x4, fixed_abs, tag = 'smem constant byte address 0x4 - core index']
  #allocation1 [shape = 'u32[144,128]{1,0:T(1,128)}', space=vmem, size = 0x12000, scoped, tag = 'internal scratch']
  %s0 = inlined_call_operand.hbm [shape: bf16[16,28], index: 0, kind: input, shape index: {}]
  %s1 = inlined_call_operand.vmem [shape: f32[16,8], index: 1, kind: input, shape index: {}]
  %s2 = inlined_call_operand.vmem [shape: bf16[28,128], index: 2, kind: input, shape index: {}]
  %s3 = inlined_call_operand.vmem [shape: f32[16,128], index: 3, kind: input, shape index: {}]
  %s4 = inlined_call_operand.hbm [shape: f32[16,128], index: 4, kind: output, shape index: {}]
  %s5 = sld [smem:[#allocation0]]
  $region53: #{tpu_custom_call.1} parent=0
    _
  %s7 = ssub.s32 1, %s5
  %s8 = scalar_select 0, %s7, %s5
  $region1: #{tpu_custom_call.1} parent=0
    #allocation2 [shape = 'u8[4096]{0}', space=vmem, size = 0x1000, scoped, tag = 'input window, operand 0']
    #allocation3 [shape = 's32[2]{0}', space=sflag, size = 0x8, scoped, tag = 'scoped memory for tpu_custom_call.1']
    #allocation4 [shape = 's32[2]{0}', space=sflag, size = 0x8, scoped, tag = 'scoped memory for tpu_custom_call.1']
    #allocation5 [shape = 'u8[8192]{0}', space=vmem, size = 0x2000, scoped, tag = 'output window, operand 0']
    %9 = vsyncpa [#allocation3], 0
    %s10 = scalar_lea.sflag [#allocation3], 1
    %11 = vsyncpa %s10, 0
    %12 = vsyncpa [#allocation4], 0
    %s13 = scalar_lea.sflag [#allocation4], 1
    %14 = vsyncpa %s13, 0
    loop: start=0, step=1, limit=4
    $region2: #{tpu_custom_call.1} parent=1 // loop_pre_header
      _
    $region3: #{tpu_custom_call.1} parent=1 // loop_header
      %s16 = sphi 0, %s20
      %p17 = scmp.ge.s32.totalorder %s16, 4
      %s23 = sphi 0, %s35
      %s24 = sphi 0, %s31
      %s25 = sphi 0, %s23
      %s26 = sphi 0, %s24
      %s27 = sphi 0, %s25
      %s28 = sphi 0, %s26
      %s38 = sphi 0, %s40
      %s41 = sphi 0, %s38
      %s42 = sphi 0, %s41
      %s58 = sphi 0, %s42
      %s64 = sphi 0, %s66
      %s67 = sphi 0, %s64
      %s68 = sphi 0, %s67
      %s84 = sphi 0, %s68
      %s90 = sphi 0, %s92
      %s93 = sphi 0, %s90
      %s94 = sphi 0, %s93
      %s110 = sphi 0, %s94
      %s116 = sphi 0, %s118
      %s119 = sphi 0, %s116
      %s120 = sphi 0, %s119
      %s136 = sphi 0, %s120
      %s144 = sphi 0, %s146
      %s147 = sphi 0, %s144
      %s148 = sphi 0, %s147
      %s164 = sphi 0, %s148
    $region4: #{tpu_custom_call.1} parent=1 // loop_header_branch
      %19 = sbr.rel (%p17) target = $region8
    $region5: #{tpu_custom_call.1} parent=1 // loop_body
      %s21 = ssub.s32 %s16, 1
      %s22 = ssub.s32 %s16, 2
      %s29 = sadd.s32 1, %s24
      %p30 = scmp.ge.s32.totalorder %s29, 1
      %s31 = scalar_select %p30, 0, %s29
      %s32 = sadd.s32 1, %s23
      %s33 = scalar_select %p30, %s32, %s23
      %p34 = scmp.ge.s32.totalorder %s33, 2
      %s35 = scalar_select %p34, 0, %s33
      %s36 = ssub.s32 %s23, %s35
      %p37 = scmp.eq.s32.totalorder %s36, 0
      %s39 = sadd.s32 %s38, 1
      %s40 = scalar_select %p37, %s38, %s39
      %p43 = pneg %p37
      %p44 = scmp.eq.s32.totalorder %s16, 1
      %p45 = por %p43, %p44
      %p46 = scmp.ne.s32.totalorder %s38, %s41
      %p47 = scmp.eq.s32.totalorder %s16, 0
      %p48 = por %p46, %p47
      %p49 = scmp.ne.s32.totalorder %s38, %s41
      %p50 = scmp.eq.s32.totalorder %s21, 1
      %p51 = por %p49, %p50
      %p52 = scmp.ne.s32.totalorder %s41, %s42
      %p53 = scmp.eq.s32.totalorder %s21, 0
      %p54 = por %p52, %p53
      %p55 = scmp.ne.s32.totalorder %s41, %s42
      %p56 = scmp.eq.s32.totalorder %s22, 1
      %p57 = por %p55, %p56
      %p59 = scmp.ne.s32.totalorder %s42, %s58
      %p60 = scmp.eq.s32.totalorder %s22, 0
      %p61 = por %p59, %p60
      %s62 = ssub.s32 %s23, %s35
      %p63 = scmp.eq.s32.totalorder %s62, 0
      %s65 = sadd.s32 %s64, 1
      %s66 = scalar_select %p63, %s64, %s65
      %p69 = pneg %p63
      %p70 = scmp.eq.s32.totalorder %s16, 1
      %p71 = por %p69, %p70
      %p72 = scmp.ne.s32.totalorder %s64, %s67
      %p73 = scmp.eq.s32.totalorder %s16, 0
      %p74 = por %p72, %p73
      %p75 = scmp.ne.s32.totalorder %s64, %s67
      %p76 = scmp.eq.s32.totalorder %s21, 1
      %p77 = por %p75, %p76
      %p78 = scmp.ne.s32.totalorder %s67, %s68
      %p79 = scmp.eq.s32.totalorder %s21, 0
      %p80 = por %p78, %p79
      %p81 = scmp.ne.s32.totalorder %s67, %s68
      %p82 = scmp.eq.s32.totalorder %s22, 1
      %p83 = por %p81, %p82
      %p85 = scmp.ne.s32.totalorder %s68, %s84
      %p86 = scmp.eq.s32.totalorder %s22, 0
      %p87 = por %p85, %p86
      %s88 = ssub.s32 %s24, %s31
      %p89 = scmp.eq.s32.totalorder %s88, 0
      %s91 = sadd.s32 %s90, 1
      %s92 = scalar_select %p89, %s90, %s91
      %p95 = pneg %p89
      %p96 = scmp.eq.s32.totalorder %s16, 1
      %p97 = por %p95, %p96
      %p98 = scmp.ne.s32.totalorder %s90, %s93
      %p99 = scmp.eq.s32.totalorder %s16, 0
      %p100 = por %p98, %p99
      %p101 = scmp.ne.s32.totalorder %s90, %s93
      %p102 = scmp.eq.s32.totalorder %s21, 1
      %p103 = por %p101, %p102
      %p104 = scmp.ne.s32.totalorder %s93, %s94
      %p105 = scmp.eq.s32.totalorder %s21, 0
      %p106 = por %p104, %p105
      %p107 = scmp.ne.s32.totalorder %s93, %s94
      %p108 = scmp.eq.s32.totalorder %s22, 1
      %p109 = por %p107, %p108
      %p111 = scmp.ne.s32.totalorder %s94, %s110
      %p112 = scmp.eq.s32.totalorder %s22, 0
      %p113 = por %p111, %p112
      %s114 = ssub.s32 %s24, %s31
      %p115 = scmp.eq.s32.totalorder %s114, 0
      %s117 = sadd.s32 %s116, 1
      %s118 = scalar_select %p115, %s116, %s117
      %p121 = pneg %p115
      %p122 = scmp.eq.s32.totalorder %s16, 1
      %p123 = por %p121, %p122
      %p124 = scmp.ne.s32.totalorder %s116, %s119
      %p125 = scmp.eq.s32.totalorder %s16, 0
      %p126 = por %p124, %p125
      %p127 = scmp.ne.s32.totalorder %s116, %s119
      %p128 = scmp.eq.s32.totalorder %s21, 1
      %p129 = por %p127, %p128
      %p130 = scmp.ne.s32.totalorder %s119, %s120
      %p131 = scmp.eq.s32.totalorder %s21, 0
      %p132 = por %p130, %p131
      %p133 = scmp.ne.s32.totalorder %s119, %s120
      %p134 = scmp.eq.s32.totalorder %s22, 1
      %p135 = por %p133, %p134
      %p137 = scmp.ne.s32.totalorder %s120, %s136
      %p138 = scmp.eq.s32.totalorder %s22, 0
      %p139 = por %p137, %p138
      %s140 = ssub.s32 %s23, %s35
      %s141 = ssub.s32 %s24, %s31
      %s142 = sor.u32 %s140, %s141
      %p143 = scmp.eq.s32.totalorder %s142, 0
      %s145 = sadd.s32 %s144, 1
      %s146 = scalar_select %p143, %s144, %s145
      %p149 = pneg %p143
      %p150 = scmp.eq.s32.totalorder %s16, 1
      %p151 = por %p149, %p150
      %p152 = scmp.ne.s32.totalorder %s144, %s147
      %p153 = scmp.eq.s32.totalorder %s16, 0
      %p154 = por %p152, %p153
      %p155 = scmp.ne.s32.totalorder %s144, %s147
      %p156 = scmp.eq.s32.totalorder %s21, 1
      %p157 = por %p155, %p156
      %p158 = scmp.ne.s32.totalorder %s147, %s148
      %p159 = scmp.eq.s32.totalorder %s21, 0
      %p160 = por %p158, %p159
      %p161 = scmp.ne.s32.totalorder %s147, %s148
      %p162 = scmp.eq.s32.totalorder %s22, 1
      %p163 = por %p161, %p162
      %p165 = scmp.ne.s32.totalorder %s148, %s164
      %p166 = scmp.eq.s32.totalorder %s22, 0
      %p167 = por %p165, %p166
      %p168 = scmp.le.s32.totalorder 1, %s16
      %p169 = scmp.lt.s32.totalorder %s16, 3
      %p170 = pnand %p168, %p169
      %p171 = pneg %p170
      // Predicated region
      $region9: #{tpu_custom_call.1} parent=5 // pred_check
        _
      $region10: #{tpu_custom_call.1} parent=5 // pred_check_branch
        %173 = sbr.rel (%p170) target = $region12
      $region11: #{tpu_custom_call.1} parent=5 // pred_region
        %s174 = ssub.s32 %s16, 1
        // Predicated region
        $region13: #{tpu_custom_call.1} parent=11 // pred_check
          %p175 = pneg %p106
        $region14: #{tpu_custom_call.1} parent=11 // pred_check_branch
          %177 = sbr.rel (%p175) target = $region16
        $region15: #{tpu_custom_call.1} parent=11 // pred_region
          %p178 = scmp.lt.s32.totalorder %s26, 0
          %s179 = scalar_select %p178, %s26, 0
          %s180 = smul.addr %s179, 4
          %s181 = scalar_lea.vmem %s2, %s180
        $region16: #{tpu_custom_call.1} parent=11 // pred_fallthru
          _
        // Predicated region
        $region17: #{tpu_custom_call.1} parent=11 // pred_check
          %p182 = pneg %p132
        $region18: #{tpu_custom_call.1} parent=11 // pred_check_branch
          %184 = sbr.rel (%p182) target = $region20
        $region19: #{tpu_custom_call.1} parent=11 // pred_region
          %p185 = scmp.lt.s32.totalorder %s26, 0
          %s186 = scalar_select %p185, %s26, 0
          %s187 = smul.addr %s186, 8
          %s188 = scalar_lea.vmem %s3, %s187
        $region20: #{tpu_custom_call.1} parent=11 // pred_fallthru
          _
      $region12: #{tpu_custom_call.1} parent=5 // pred_fallthru
        _
      %p189 = scmp.lt.s32.totalorder %s16, 2
      // Predicated region
      $region21: #{tpu_custom_call.1} parent=5 // pred_check
        %p190 = pneg %p189
      $region22: #{tpu_custom_call.1} parent=5 // pred_check_branch
        %192 = sbr.rel (%p190) target = $region24
      $region23: #{tpu_custom_call.1} parent=5 // pred_region
        // Predicated region
        $region25: #{tpu_custom_call.1} parent=23 // pred_check
          %p193 = pneg %p48
        $region26: #{tpu_custom_call.1} parent=23 // pred_check_branch
          %195 = sbr.rel (%p193) target = $region28
        $region27: #{tpu_custom_call.1} parent=23 // pred_region
          %s196 = sand.u32 %s38, 1
          %s197 = scalar_lea.sflag [#allocation3], %s196
          %s198 = sand.u32 %s38, 1
          %s199 = smul.addr %s198, 4
          %s200 = scalar_lea.vmem [#allocation2], %s199
          %s202 = ssub.s32 64, 64
          %203 = vsyncadd %s197, %s202
          %s204 = smul.addr %s23, 64
          %s205 = scalar_lea.hbm %s0, %s204
          %s207 = sshll.u32 %s200, 4
          %s208 = int_to_ptr.vmem [resolvable:$true] %s207
          %210 = dma.hbm_to_vmem [thread:$0]  %s205, 64, %s208, %s197
        $region28: #{tpu_custom_call.1} parent=23 // pred_fallthru
          _
        // Predicated region
        $region29: #{tpu_custom_call.1} parent=23 // pred_check
          %p211 = pneg %p74
        $region30: #{tpu_custom_call.1} parent=23 // pred_check_branch
          %213 = sbr.rel (%p211) target = $region32
        $region31: #{tpu_custom_call.1} parent=23 // pred_region
          %p214 = scmp.lt.s32.totalorder %s23, 1
          %s215 = scalar_select %p214, %s23, 1
          %s216 = smul.addr %s215, 8
          %s217 = scalar_lea.vmem %s1, %s216
        $region32: #{tpu_custom_call.1} parent=23 // pred_fallthru
          _
      $region24: #{tpu_custom_call.1} parent=5 // pred_fallthru
        _
      %p218 = scmp.le.s32.totalorder 1, %s16
      %p219 = scmp.lt.s32.totalorder %s16, 3
      %p220 = pnand %p218, %p219
      %p221 = pneg %p220
      // Predicated region
      $region33: #{tpu_custom_call.1} parent=5 // pred_check
        _
      $region34: #{tpu_custom_call.1} parent=5 // pred_check_branch
        %223 = sbr.rel (%p220) target = $region36
      $region35: #{tpu_custom_call.1} parent=5 // pred_region
        %s224 = ssub.s32 %s16, 1
        %s225 = sand.u32 %s41, 1
        %s226 = scalar_lea.sflag [#allocation3], %s225
        %s227 = sand.u32 %s41, 1
        %s228 = smul.addr %s227, 4
        %s229 = scalar_lea.vmem [#allocation2], %s228
        // Predicated region
        $region37: #{tpu_custom_call.1} parent=35 // pred_check
          %p230 = pneg %p54
        $region38: #{tpu_custom_call.1} parent=35 // pred_check_branch
          %232 = sbr.rel (%p230) target = $region40
        $region39: #{tpu_custom_call.1} parent=35 // pred_region
          %233 = dma.done %s226, 64
        $region40: #{tpu_custom_call.1} parent=35 // pred_fallthru
          _
        %s234 = sand.u32 %s41, 1
        %s235 = scalar_lea.sflag [#allocation3], %s234
        %s236 = sand.u32 %s41, 1
        %s237 = smul.addr %s236, 4
        %s238 = scalar_lea.vmem [#allocation2], %s237
        %p239 = pneg %p54
        %p240 = pneg %p51
        %p241 = scmp.lt.s32.totalorder %s25, 1
        %s242 = scalar_select %p241, %s25, 1
        %s243 = smul.addr %s242, 8
        %s244 = scalar_lea.vmem %s1, %s243
        %p245 = pneg %p80
        %p246 = pneg %p77
        %p247 = scmp.lt.s32.totalorder %s26, 0
        %s248 = scalar_select %p247, %s26, 0
        %s249 = smul.addr %s248, 4
        %s250 = scalar_lea.vmem %s2, %s249
        %p251 = pneg %p106
        %p252 = pneg %p103
        %p253 = scmp.lt.s32.totalorder %s26, 0
        %s254 = scalar_select %p253, %s26, 0
        %s255 = smul.addr %s254, 8
        %s256 = scalar_lea.vmem %s3, %s255
        %p257 = pneg %p132
        %p258 = pneg %p129
        %p259 = pneg %p160
        %p260 = pneg %p157
        %s261 = sand.u32 %s147, 1
        %s262 = scalar_lea.sflag [#allocation4], %s261
        %s263 = sand.u32 %s147, 1
        %s264 = smul.addr %s263, 8
        %s265 = scalar_lea.vmem [#allocation5], %s264
        %p266 = scmp.lt.s32.totalorder %s25, 1
        %s267 = scalar_select %p266, %s25, 1
        %s268 = smul.addr %s267, 8
        %s269 = scalar_lea.vmem %s1, %s268
        %p270 = scmp.lt.s32.totalorder %s26, 0
        %s271 = scalar_select %p270, %s26, 0
        %s272 = smul.addr %s271, 4
        %s273 = scalar_lea.vmem %s2, %s272
        %p274 = scmp.lt.s32.totalorder %s26, 0
        %s275 = scalar_select %p274, %s26, 0
        %s276 = smul.addr %s275, 8
        %s277 = scalar_lea.vmem %s3, %s276
        %v279 = vld [vmem:[%s229] sm:$0xf]
        %v280 = vld [vmem:[%s273] sm:$0xf]
        %v281 = vld [vmem:[%s273 + $0x4] sm:$0xf]
        %v282 = vld [vmem:[%s273 + $0x8] sm:$0xf]
        %v283 = vld [vmem:[%s273 + $0xc] sm:$0x3]
        %v284 = vld [vmem:[%s269] sm:$0xff]
        %v285 = vld [vmem:[%s277] sm:$0xff]
        %v286 = vld [vmem:[%s277 + $0x8] sm:$0xff]
        %288 = vset.pattern.permute.xlu0 0
        %289 = vperm.xlu0 %288, %v284
        %v290 = vpop.permute.xlu0 %289
        %v292 = vlaneseq
        %v293 = vshrl.u32 %v292, 7
        %v294 = vsub.s32 0, %v293
        %v295 = vrot.slane %v285, %v294
        %v296 = vsub.f32 %v290, %v295
        %v297 = vand.u32 2147483647, %v296
        %298 = vset.pattern.permute.xlu0 1
        %299 = vperm.xlu0 %298, %v284
        %v300 = vpop.permute.xlu0 %299
        %v302 = vlaneseq
        %v303 = vshrl.u32 %v302, 7
        %v304 = vsub.s32 1, %v303
        %v305 = vrot.slane %v285, %v304
        %v306 = vsub.f32 %v300, %v305
        %v307 = vand.u32 2147483647, %v306
        %v308 = vadd.f32 %v297, %v307
        %309 = vset.pattern.permute.xlu0 2
        %310 = vperm.xlu0 %309, %v284
        %v311 = vpop.permute.xlu0 %310
        %v313 = vlaneseq
        %v314 = vshrl.u32 %v313, 7
        %v315 = vsub.s32 2, %v314
        %v316 = vrot.slane %v285, %v315
        %v317 = vsub.f32 %v311, %v316
        %v318 = vand.u32 2147483647, %v317
        %v319 = vadd.f32 %v308, %v318
        %320 = vset.pattern.permute.xlu0 3
        %321 = vperm.xlu0 %320, %v284
        %v322 = vpop.permute.xlu0 %321
        %v324 = vlaneseq
        %v325 = vshrl.u32 %v324, 7
        %v326 = vsub.s32 3, %v325
        %v327 = vrot.slane %v285, %v326
        %v328 = vsub.f32 %v322, %v327
        %v329 = vand.u32 2147483647, %v328
        %v330 = vadd.f32 %v319, %v329
        %331 = vset.pattern.permute.xlu0 4
        %332 = vperm.xlu0 %331, %v284
        %v333 = vpop.permute.xlu0 %332
        %v335 = vlaneseq
        %v336 = vshrl.u32 %v335, 7
        %v337 = vsub.s32 4, %v336
        %v338 = vrot.slane %v285, %v337
        %v339 = vsub.f32 %v333, %v338
        %v340 = vand.u32 2147483647, %v339
        %341 = vset.pattern.permute.xlu0 5
        %342 = vperm.xlu0 %341, %v284
        %v343 = vpop.permute.xlu0 %342
        %v345 = vlaneseq
        %v346 = vshrl.u32 %v345, 7
        %v347 = vsub.s32 5, %v346
        %v348 = vrot.slane %v285, %v347
        %v349 = vsub.f32 %v343, %v348
        %v350 = vand.u32 2147483647, %v349
        %v351 = vadd.f32 %v340, %v350
        %352 = vset.pattern.permute.xlu0 6
        %353 = vperm.xlu0 %352, %v284
        %v354 = vpop.permute.xlu0 %353
        %v356 = vlaneseq
        %v357 = vshrl.u32 %v356, 7
        %v358 = vsub.s32 6, %v357
        %v359 = vrot.slane %v285, %v358
        %v360 = vsub.f32 %v354, %v359
        %v361 = vand.u32 2147483647, %v360
        %v362 = vadd.f32 %v351, %v361
        %363 = vset.pattern.permute.xlu0 7
        %364 = vperm.xlu0 %363, %v284
        %v365 = vpop.permute.xlu0 %364
        %v367 = vlaneseq
        %v368 = vshrl.u32 %v367, 7
        %v369 = vsub.s32 7, %v368
        %v370 = vrot.slane %v285, %v369
        %v371 = vsub.f32 %v365, %v370
        %v372 = vand.u32 2147483647, %v371
        %v373 = vadd.f32 %v362, %v372
        %v374 = vlaneseq
        %v375 = vshrl.u32 %v374, 7
        %v376 = vsub.s32 0, %v375
        %v377 = vrot.slane %v286, %v376
        %v378 = vmul.f32 %v373, %v377
        %v379 = vmax.f32 %v330, %v378
        %v380 = vmul.f32 %v379, 2.5
        %v385 = vunpack.c.l.b16 %v280
        %v386 = vunpack.c.l.b16 %v281
        %v387 = vunpack.c.l.b16 %v282
        %v388 = vunpack.c.l.b16 %v283
        %v389 = vpack.c.b16 %v386, %v385
        %v390 = vpack.c.b16 %v388, %v387
        %vm392 = vcmask 228352
        %v394 = vsel %vm392, %v279, 0
        %vm396 = vcmask 1045504
        %v398 = vsel %vm396, %v390, 0
        %400 = vmatprep.subr.bf16.mxu0 0
        %401 = vmatpush1.bf16.msra.mxu0 %v389
        %402 = vmatprep.subr.bf16.mxu0 0
        %403 = vmatpush1.bf16.msra.mxu0 %v398
        %404 = vmatprep.subr.bf16.mxu0 0
        %405 = vmatpush1.bf16.msra.mxu0 0
        %406 = vmatprep.subr.bf16.mxu0 0
        %407 = vmatpush1.bf16.msra.mxu0 0
        %408 = vmatprep.subr.bf16.mxu0 0
        %409 = vmatpush1.bf16.msra.mxu0 0
        %410 = vmatprep.subr.bf16.mxu0 0
        %411 = vmatpush1.bf16.msra.mxu0 0
        %412 = vmatprep.subr.bf16.mxu0 0
        %413 = vmatpush1.bf16.msra.mxu0 0
        %414 = vmatprep.subr.bf16.mxu0 0
        %415 = vmatpush1.bf16.msra.mxu0 0
        %416 = vmatprep.subr.bf16.mxu0 0
        %417 = vmatpush1.bf16.msra.mxu0 0
        %418 = vmatprep.subr.bf16.mxu0 0
        %419 = vmatpush1.bf16.msra.mxu0 0
        %420 = vmatprep.subr.bf16.mxu0 0
        %421 = vmatpush1.bf16.msra.mxu0 0
        %422 = vmatprep.subr.bf16.mxu0 0
        %423 = vmatpush1.bf16.msra.mxu0 0
        %424 = vmatprep.subr.bf16.mxu0 0
        %425 = vmatpush1.bf16.msra.mxu0 0
        %426 = vmatprep.subr.bf16.mxu0 0
        %427 = vmatpush1.bf16.msra.mxu0 0
        %428 = vmatprep.subr.bf16.mxu0 0
        %429 = vmatpush1.bf16.msra.mxu0 0
        %430 = vmatprep.subr.bf16.mxu0 0
        %431 = vmatpush1.bf16.msra.mxu0 0
        %432 = vmatprep.mubr.bf16.mxu0 0
        %433 = vmatmul.mubr.bf16.gmra.mrb[0].mxu0 %v394
        %v434 = vpop.f32.mrb[0].mxu0
        %v435 = vadd.f32 %v380, %v434
        %v436 = vpop.f32.mrb[0].mxu0
        %v437 = vpop.f32.mrb[0].mxu0
        %v438 = vpop.f32.mrb[0].mxu0
        %439 = vdwg.mxu0
        %v440 = vmul.f32 %v284, 0.5
        %442 = vrot.lane.b32.xlu0 %v440, 126
        %v443 = vpop.permute.xlu0 %442
        %v445 = vsub.f32 %v284, %v443
        %v446 = vadd.f32 %v284, %v443
        %v447 = vmul.f32 %v285, 0.5
        %v449 = vrot.slane %v447, 2
        %v451 = vsub.f32 %v285, %v449
        %v452 = vadd.f32 %v285, %v449
        %v453 = vsub.f32 %v446, %v445
        %455 = vrot.lane.b32.xlu0 %v453, 127
        %v456 = vpop.permute.xlu0 %455
        %v458 = vmul.f32 %v453, %v456
        %v459 = vsub.f32 %v452, %v451
        %v461 = vrot.slane %v459, 1
        %v463 = vmul.f32 %v459, %v461
        %465 = vset.pattern.permute.xlu0 0
        %466 = vperm.xlu0 %465, %v446
        %v467 = vpop.permute.xlu0 %466
        %v469 = vlaneseq
        %v470 = vshrl.u32 %v469, 7
        %v471 = vsub.s32 0, %v470
        %v472 = vrot.slane %v452, %v471
        %v473 = vmin.f32 %v467, %v472
        %475 = vset.pattern.permute.xlu0 0
        %476 = vperm.xlu0 %475, %v445
        %v477 = vpop.permute.xlu0 %476
        %v479 = vlaneseq
        %v480 = vshrl.u32 %v479, 7
        %v481 = vsub.s32 0, %v480
        %v482 = vrot.slane %v451, %v481
        %v483 = vmax.f32 %v477, %v482
        %v484 = vsub.f32 %v473, %v483
        %v485 = vmax.f32 %v484, 0.0
        %486 = vset.pattern.permute.xlu0 1
        %487 = vperm.xlu0 %486, %v446
        %v488 = vpop.permute.xlu0 %487
        %v490 = vlaneseq
        %v491 = vshrl.u32 %v490, 7
        %v492 = vsub.s32 1, %v491
        %v493 = vrot.slane %v452, %v492
        %v494 = vmin.f32 %v488, %v493
        %495 = vset.pattern.permute.xlu0 1
        %496 = vperm.xlu0 %495, %v445
        %v497 = vpop.permute.xlu0 %496
        %v499 = vlaneseq
        %v500 = vshrl.u32 %v499, 7
        %v501 = vsub.s32 1, %v500
        %v502 = vrot.slane %v451, %v501
        %v503 = vmax.f32 %v497, %v502
        %v504 = vsub.f32 %v494, %v503
        %v505 = vmax.f32 %v504, 0.0
        %v506 = vmul.f32 %v485, %v505
        %508 = vset.pattern.permute.xlu0 0
        %509 = vperm.xlu0 %508, %v458
        %v510 = vpop.permute.xlu0 %509
        %v512 = vlaneseq
        %v513 = vshrl.u32 %v512, 7
        %v514 = vsub.s32 0, %v513
        %v515 = vrot.slane %v463, %v514
        %v516 = vadd.f32 %v510, %v515
        %v517 = vsub.f32 %v516, %v506
        %v518 = vmax.f32 %v517, 1e-12
        %v519 = vrcp.pop %v518
        %v520 = vmul.f32 %v506, %v519
        %v521 = vmax.f32 %v467, %v472
        %v522 = vmin.f32 %v477, %v482
        %v523 = vsub.f32 %v521, %v522
        %v524 = vmax.f32 %v523, 0.0
        %v525 = vmax.f32 %v488, %v493
        %v526 = vmin.f32 %v497, %v502
        %v527 = vsub.f32 %v525, %v526
        %v528 = vmax.f32 %v527, 0.0
        %v529 = vmul.f32 %v524, %v528
        %v530 = vsub.f32 %v529, %v517
        %v531 = vmax.f32 %v529, 1e-12
        %v532 = vrcp.pop %v531
        %v533 = vmul.f32 %v530, %v532
        %v534 = vsub.f32 %v520, %v533
        %v535 = vsub.f32 0.0, %v534
        %536 = vset.pattern.permute.xlu0 4
        %537 = vperm.xlu0 %536, %v446
        %v538 = vpop.permute.xlu0 %537
        %v540 = vlaneseq
        %v541 = vshrl.u32 %v540, 7
        %v542 = vsub.s32 4, %v541
        %v543 = vrot.slane %v452, %v542
        %v544 = vmin.f32 %v538, %v543
        %545 = vset.pattern.permute.xlu0 4
        %546 = vperm.xlu0 %545, %v445
        %v547 = vpop.permute.xlu0 %546
        %v549 = vlaneseq
        %v550 = vshrl.u32 %v549, 7
        %v551 = vsub.s32 4, %v550
        %v552 = vrot.slane %v451, %v551
        %v553 = vmax.f32 %v547, %v552
        %v554 = vsub.f32 %v544, %v553
        %v555 = vmax.f32 %v554, 0.0
        %556 = vset.pattern.permute.xlu0 5
        %557 = vperm.xlu0 %556, %v446
        %v558 = vpop.permute.xlu0 %557
        %v560 = vlaneseq
        %v561 = vshrl.u32 %v560, 7
        %v562 = vsub.s32 5, %v561
        %v563 = vrot.slane %v452, %v562
        %v564 = vmin.f32 %v558, %v563
        %565 = vset.pattern.permute.xlu0 5
        %566 = vperm.xlu0 %565, %v445
        %v567 = vpop.permute.xlu0 %566
        %v569 = vlaneseq
        %v570 = vshrl.u32 %v569, 7
        %v571 = vsub.s32 5, %v570
        %v572 = vrot.slane %v451, %v571
        %v573 = vmax.f32 %v567, %v572
        %v574 = vsub.f32 %v564, %v573
        %v575 = vmax.f32 %v574, 0.0
        %v576 = vmul.f32 %v555, %v575
        %577 = vset.pattern.permute.xlu0 4
        %578 = vperm.xlu0 %577, %v458
        %v579 = vpop.permute.xlu0 %578
        %v581 = vlaneseq
        %v582 = vshrl.u32 %v581, 7
        %v583 = vsub.s32 4, %v582
        %v584 = vrot.slane %v463, %v583
        %v585 = vadd.f32 %v579, %v584
        %v586 = vsub.f32 %v585, %v576
        %v587 = vmax.f32 %v586, 1e-12
        %v588 = vrcp.pop %v587
        %v589 = vmul.f32 %v576, %v588
        %v590 = vmax.f32 %v538, %v543
        %v591 = vmin.f32 %v547, %v552
        %v592 = vsub.f32 %v590, %v591
        %v593 = vmax.f32 %v592, 0.0
        %v594 = vmax.f32 %v558, %v563
        %v595 = vmin.f32 %v567, %v572
        %v596 = vsub.f32 %v594, %v595
        %v597 = vmax.f32 %v596, 0.0
        %v598 = vmul.f32 %v593, %v597
        %v599 = vsub.f32 %v598, %v586
        %v600 = vmax.f32 %v598, 1e-12
        %v601 = vrcp.pop %v600
        %v602 = vmul.f32 %v599, %v601
        %v603 = vsub.f32 %v589, %v602
        %v604 = vsub.f32 0.0, %v603
        %v605 = vlaneseq
        %v606 = vshrl.u32 %v605, 7
        %v607 = vsub.s32 1, %v606
        %v608 = vrot.slane %v286, %v607
        %v609 = vmul.f32 %v535, %v608
        %v610 = vadd.f32 %v604, %v609
        %v611 = vmax.f32 %v535, %v610
        %v612 = vadd.f32 %v435, %v611
        %613 = vst [vmem:[%s265] sm:$0xff] %v612
        %s614 = sand.u32 %s147, 1
        %s615 = scalar_lea.sflag [#allocation4], %s614
        %s616 = sand.u32 %s147, 1
        %s617 = smul.addr %s616, 8
        %s618 = scalar_lea.vmem [#allocation5], %s617
        // Predicated region
        $region41: #{tpu_custom_call.1} parent=35 // pred_check
          %p619 = pneg %p157
        $region42: #{tpu_custom_call.1} parent=35 // pred_check_branch
          %621 = sbr.rel (%p619) target = $region44
        $region43: #{tpu_custom_call.1} parent=35 // pred_region
          %s623 = ssub.s32 128, 128
          %624 = vsyncadd %s615, %s623
          %s625 = sadd.s32 %s26, %s25
          %s626 = smul.addr %s625, 128
          %s627 = scalar_lea.hbm %s4, %s626
          %s629 = sshll.u32 %s618, 4
          %s630 = int_to_ptr.vmem [resolvable:$true] %s629
          %632 = dma.vmem_to_hbm [thread:$0]  %s630, 128, %s627, %s615
        $region44: #{tpu_custom_call.1} parent=35 // pred_fallthru
          _
      $region36: #{tpu_custom_call.1} parent=5 // pred_fallthru
        _
      %p633 = scmp.le.s32.totalorder 2, %s16
      // Predicated region
      $region45: #{tpu_custom_call.1} parent=5 // pred_check
        %p634 = pneg %p633
      $region46: #{tpu_custom_call.1} parent=5 // pred_check_branch
        %636 = sbr.rel (%p634) target = $region48
      $region47: #{tpu_custom_call.1} parent=5 // pred_region
        %s637 = ssub.s32 %s16, 2
        // Predicated region
        $region49: #{tpu_custom_call.1} parent=47 // pred_check
          %p638 = pneg %p163
        $region50: #{tpu_custom_call.1} parent=47 // pred_check_branch
          %640 = sbr.rel (%p638) target = $region52
        $region51: #{tpu_custom_call.1} parent=47 // pred_region
          %s641 = sand.u32 %s148, 1
          %s642 = scalar_lea.sflag [#allocation4], %s641
          %s643 = sand.u32 %s148, 1
          %s644 = smul.addr %s643, 8
          %s645 = scalar_lea.vmem [#allocation5], %s644
          %646 = dma.done %s642, 128
        $region52: #{tpu_custom_call.1} parent=47 // pred_fallthru
          _
      $region48: #{tpu_custom_call.1} parent=5 // pred_fallthru
        _
    $region6: #{tpu_custom_call.1} parent=1 // loop_footer
      %s20 = sadd.s32 1, %s16
    $region7: #{tpu_custom_call.1} parent=1 // loop_footer_branch
      %15 = sbr.rel target = $region3
    $region8: #{tpu_custom_call.1} parent=1 // loop_exit
      _
    %647 = vsyncpa [#allocation3], 1
    %s648 = scalar_lea.sflag [#allocation3], 1
    %649 = vsyncpa %s648, 1
    %650 = vsyncpa [#allocation4], 1
    %s651 = scalar_lea.sflag [#allocation4], 1
    %652 = vsyncpa %s651, 1

</llo_original>
